<compile_context>
chip_gen: v6e
topology: v6e:2x2x1
jax: 0.10.0
libtpu: 0.0.40
codegen_flags: <defaults>
</compile_context>

<pallas_src>
import functools

import jax
import jax.numpy as jnp
from jax.experimental import pallas as pl
from jax.experimental.pallas import tpu as pltpu


def _edge_predictor_kernel(xi_ref, xj_ref, w1a_ref, w1b_ref, b1_ref,
                           w2_ref, b2_ref, out_ref):
    # xi/xj: (tile_n, dim) streamed; w1a/w1b: (dim, dim) resident (compute dtype)
    # b1: (1, dim) f32; w2: (1, dim) f32 (lane dense); b2: (1, 1) f32
    cdt = w1a_ref.dtype
    xi = xi_ref[...].astype(cdt)            # no-op if inputs already bf16
    xj = xj_ref[...].astype(cdt)

    # First linear layer: concat fused into two MXU matmuls, f32 accumulation.
    h = jnp.dot(xi, w1a_ref[...], preferred_element_type=jnp.float32)
    h = h + jnp.dot(xj, w1b_ref[...], preferred_element_type=jnp.float32)
    h = jnp.maximum(h + b1_ref[...], 0.0)   # bias broadcast over rows, ReLU

    # Second linear layer on VPU/XLU: broadcast multiply + lane reduction
    # (avoids a lane-sparse (dim,1) weight block and an N=1 MXU matmul).
    logit = jnp.sum(h * w2_ref[...], axis=-1, keepdims=True) + b2_ref[...]
    out_ref[...] = jax.nn.sigmoid(logit).astype(out_ref.dtype)


def edge_predictor(xi, xj, w1, b1, w2, b2, *, tile_n=None,
                   compute_dtype=jnp.bfloat16):
    """Pallas TPU EdgePredictor forward.

    xi, xj : (N, dim)       node features for each edge endpoint
    w1     : (dim, 2*dim)   PyTorch Linear(2*dim, dim).weight layout
    b1     : (dim,)
    w2     : (1, dim)       PyTorch Linear(dim, 1).weight layout
    b2     : (1,)
    returns: (N, 1) edge probabilities.
    """
    N, dim = xi.shape
    assert N > 0
    assert xj.shape == (N, dim)
    assert w1.shape == (dim, 2 * dim) and b1.shape == (dim,)
    assert w2.shape == (1, dim) and b2.shape == (1,)

    # Split + transpose W1 so the concat never materializes:
    #   cat([xi, xj]) @ W1^T == xi @ W1[:, :dim]^T + xj @ W1[:, dim:]^T
    # Big weights are cast to the compute dtype ONCE here (not per tile).
    w1a = jnp.transpose(w1[:, :dim]).astype(compute_dtype)   # (dim, dim)
    w1b = jnp.transpose(w1[:, dim:]).astype(compute_dtype)   # (dim, dim)
    # Biases / second-layer row are tiny (O(dim) bytes): keep them f32 so the
    # f32 accumulator path stays accurate.
    b1r = b1.reshape(1, dim).astype(jnp.float32)
    w2r = w2.reshape(1, dim).astype(jnp.float32)              # lane-dense row
    b2r = b2.reshape(1, 1).astype(jnp.float32)

    # --- Row-tile size selection -------------------------------------------
    # Target a few MiB per streamed tile (amortizes ~0.35us/step overhead and
    # the per-tile MXU weight pushes) while staying well inside VMEM.
    if tile_n is None:
        if dim <= 256:
            tile_n = 2048
        elif dim <= 512:
            tile_n = 1024
        elif dim <= 1024:
            tile_n = 512
        else:
            tile_n = 256
    else:
        tile_n = max(8, (int(tile_n) // 8) * 8)
    if N <= tile_n:
        tile_n = N                          # single full block (layout-legal)
    if pl.cdiv(N, tile_n) < 2 and N >= 16:
        # v7x has 2 TensorCores; give the 'parallel' grid axis >= 2 steps so
        # both cores get work.  ceil(N/2) rounded up to a multiple of 8.
        tile_n = ((N + 15) // 16) * 8

    num_tiles = pl.cdiv(N, tile_n)

    # --- VMEM budget (raise v5e's 16 MiB default; cap at v7x's 64 MiB) ------
    in_itemsize = jnp.dtype(xi.dtype).itemsize
    w_itemsize = jnp.dtype(compute_dtype).itemsize
    resident = 2 * 2 * dim * dim * w_itemsize          # W1a+W1b, double-buffered
    streamed = 2 * 2 * tile_n * dim * in_itemsize      # xi+xj, double-buffered
    vmem_limit_bytes = int(min(max(resident + streamed + (8 << 20), 32 << 20),
                               64 << 20))

    cost = pl.CostEstimate(
        flops=int(4 * N * dim * dim + 4 * N * dim),
        transcendentals=int(N),                         # sigmoid
        bytes_accessed=int(2 * N * dim * in_itemsize
                           + 2 * dim * dim * w_itemsize + N * 4),
    )

    out = pl.pallas_call(
        _edge_predictor_kernel,
        out_shape=jax.ShapeDtypeStruct((N, 1), xi.dtype),
        grid=(num_tiles,),
        in_specs=[
            pl.BlockSpec((tile_n, dim), lambda i: (i, 0)),   # xi tile (streamed)
            pl.BlockSpec((tile_n, dim), lambda i: (i, 0)),   # xj tile (streamed)
            pl.BlockSpec((dim, dim), lambda i: (0, 0)),      # W1a (resident)
            pl.BlockSpec((dim, dim), lambda i: (0, 0)),      # W1b (resident)
            pl.BlockSpec((1, dim), lambda i: (0, 0)),        # b1
            pl.BlockSpec((1, dim), lambda i: (0, 0)),        # w2 row (lane dense)
            pl.BlockSpec((1, 1), lambda i: (0, 0)),          # b2
        ],
        out_specs=pl.BlockSpec((tile_n, 1), lambda i: (i, 0)),
        compiler_params=pltpu.CompilerParams(
            dimension_semantics=("parallel",),
            vmem_limit_bytes=vmem_limit_bytes),
        cost_estimate=cost,
    )(xi, xj, w1a, w1b, b1r, w2r, b2r)
    return out


def edge_predictor_ref(xi, xj, w1, b1, w2, b2):
    """Pure-JAX reference mirroring the PyTorch module (f32, highest precision)."""
    x = jnp.concatenate([xi, xj], axis=-1)
    h = jnp.maximum(jnp.dot(x, w1.T, precision="highest") + b1, 0.0)
    return jax.nn.sigmoid(jnp.dot(h, w2.T, precision="highest") + b2)


if __name__ == "__main__":
    # Small deterministic example: N=20 edges (ragged vs. tile -> exercises the
    # masked last block and the 2-step grid), dim=128 node features.
    key = jax.random.PRNGKey(0)
    k_xi, k_xj, k_w1, k_b1, k_w2, k_b2 = jax.random.split(key, 6)
    N, dim = 20, 128
    xi = jax.random.normal(k_xi, (N, dim), dtype=jnp.float32)
    xj = jax.random.normal(k_xj, (N, dim), dtype=jnp.float32)
    w1 = jax.random.normal(k_w1, (dim, 2 * dim), dtype=jnp.float32) * 0.1
    b1 = jax.random.normal(k_b1, (dim,), dtype=jnp.float32) * 0.1
    w2 = jax.random.normal(k_w2, (1, dim), dtype=jnp.float32) * 0.1
    b2 = jax.random.normal(k_b2, (1,), dtype=jnp.float32) * 0.1

    ref = edge_predictor_ref(xi, xj, w1, b1, w2, b2)

    # Default fast path: bf16 MXU feeds, f32 accumulation.
    out = jax.block_until_ready(edge_predictor(xi, xj, w1, b1, w2, b2))
    assert out.shape == (N, 1), out.shape
    assert jnp.allclose(out, ref, atol=2e-2, rtol=2e-2), \
        float(jnp.max(jnp.abs(out - ref)))

    # Full-f32 path: tighter check against the reference.
    out_f32 = jax.block_until_ready(
        edge_predictor(xi, xj, w1, b1, w2, b2, compute_dtype=jnp.float32))
    assert out_f32.shape == (N, 1), out_f32.shape
    assert jnp.allclose(out_f32, ref, atol=5e-3, rtol=5e-3), \
        float(jnp.max(jnp.abs(out_f32 - ref)))

    print("KERNEL_OK")
</pallas_src>

<mosaic_0001>
module attributes {stable_mosaic.version = 11 : i64} {
  func.func @_edge_predictor_kernel(%arg0: i32, %arg1: memref<16x128xf32, #tpu.memory_space<vmem>>, %arg2: memref<16x128xf32, #tpu.memory_space<vmem>>, %arg3: memref<128x128xbf16, #tpu.memory_space<vmem>>, %arg4: memref<128x128xbf16, #tpu.memory_space<vmem>>, %arg5: memref<1x128xf32, #tpu.memory_space<vmem>>, %arg6: memref<1x128xf32, #tpu.memory_space<vmem>>, %arg7: memref<1x1xf32, #tpu.memory_space<vmem>>, %arg8: memref<16x1xf32, #tpu.memory_space<vmem>>) attributes {dimension_semantics = [#tpu.dimension_semantics<parallel>], iteration_bounds = array<i64: 2>, scalar_prefetch = 0 : i64, scratch_operands = 0 : i64, tpu.core_type = #tpu.core_type<tc>, window_params = [{transform_indices = @transform_0, window_bounds = array<i64: 16, 128>}, {transform_indices = @transform_1, window_bounds = array<i64: 16, 128>}, {pipeline_mode = #tpu.pipeline_mode<synchronous>, transform_indices = @transform_2, window_bounds = array<i64: 128, 128>}, {pipeline_mode = #tpu.pipeline_mode<synchronous>, transform_indices = @transform_3, window_bounds = array<i64: 128, 128>}, {pipeline_mode = #tpu.pipeline_mode<synchronous>, transform_indices = @transform_4, window_bounds = array<i64: 1, 128>}, {pipeline_mode = #tpu.pipeline_mode<synchronous>, transform_indices = @transform_5, window_bounds = array<i64: 1, 128>}, {pipeline_mode = #tpu.pipeline_mode<synchronous>, transform_indices = @transform_6, window_bounds = array<i64: 1, 1>}, {transform_indices = @transform_7, window_bounds = array<i64: 16, 1>}]} {
    %c0 = arith.constant 0 : index
    %c0_0 = arith.constant 0 : index
    %0 = vector.load %arg1[%c0, %c0_0] : memref<16x128xf32, #tpu.memory_space<vmem>>, vector<16x128xf32>
    %1 = arith.truncf %0 : vector<16x128xf32> to vector<16x128xbf16>
    %c0_1 = arith.constant 0 : index
    %c0_2 = arith.constant 0 : index
    %2 = vector.load %arg2[%c0_1, %c0_2] : memref<16x128xf32, #tpu.memory_space<vmem>>, vector<16x128xf32>
    %3 = arith.truncf %2 : vector<16x128xf32> to vector<16x128xbf16>
    %c0_3 = arith.constant 0 : index
    %c0_4 = arith.constant 0 : index
    %4 = vector.load %arg3[%c0_3, %c0_4] : memref<128x128xbf16, #tpu.memory_space<vmem>>, vector<128x128xbf16>
    %cst = arith.constant dense<0.000000e+00> : vector<16x128xf32>
    %5 = tpu.matmul %1, %4, %cst {dimension_numbers = #tpu.dot_dimension_numbers<[1], [0], [0], [1], [0, 0, 1, 1], [], []>} : vector<16x128xbf16>, vector<128x128xbf16>, vector<16x128xf32> -> vector<16x128xf32>
    %c0_5 = arith.constant 0 : index
    %c0_6 = arith.constant 0 : index
    %6 = vector.load %arg4[%c0_5, %c0_6] : memref<128x128xbf16, #tpu.memory_space<vmem>>, vector<128x128xbf16>
    %cst_7 = arith.constant dense<0.000000e+00> : vector<16x128xf32>
    %7 = tpu.matmul %3, %6, %cst_7 {dimension_numbers = #tpu.dot_dimension_numbers<[1], [0], [0], [1], [0, 0, 1, 1], [], []>} : vector<16x128xbf16>, vector<128x128xbf16>, vector<16x128xf32> -> vector<16x128xf32>
    %8 = arith.addf %5, %7 : vector<16x128xf32>
    %c0_8 = arith.constant 0 : index
    %c0_9 = arith.constant 0 : index
    %9 = vector.load %arg5[%c0_8, %c0_9] : memref<1x128xf32, #tpu.memory_space<vmem>>, vector<1x128xf32>
    %10 = vector.broadcast %9 : vector<1x128xf32> to vector<16x128xf32>
    %11 = arith.addf %8, %10 : vector<16x128xf32>
    %cst_10 = arith.constant 0.000000e+00 : f32
    %12 = vector.broadcast %cst_10 : f32 to vector<16x128xf32>
    %13 = arith.maximumf %11, %12 : vector<16x128xf32>
    %c0_11 = arith.constant 0 : index
    %c0_12 = arith.constant 0 : index
    %14 = vector.load %arg6[%c0_11, %c0_12] : memref<1x128xf32, #tpu.memory_space<vmem>>, vector<1x128xf32>
    %15 = vector.broadcast %14 : vector<1x128xf32> to vector<16x128xf32>
    %16 = arith.mulf %13, %15 : vector<16x128xf32>
    %cst_13 = arith.constant dense<0.000000e+00> : vector<16xf32>
    %17 = vector.multi_reduction <add>, %16, %cst_13 [1] : vector<16x128xf32> to vector<16xf32>
    %18 = vector.shape_cast %17 : vector<16xf32> to vector<16x1xf32>
    %c0_14 = arith.constant 0 : index
    %c0_15 = arith.constant 0 : index
    %19 = vector.load %arg7[%c0_14, %c0_15] : memref<1x1xf32, #tpu.memory_space<vmem>>, vector<1x1xf32>
    %20 = vector.broadcast %19 : vector<1x1xf32> to vector<16x1xf32>
    %21 = arith.addf %18, %20 : vector<16x1xf32>
    %22 = arith.negf %21 : vector<16x1xf32>
    %23 = math.exp %22 : vector<16x1xf32>
    %cst_16 = arith.constant 1.000000e+00 : f32
    %24 = vector.broadcast %cst_16 : f32 to vector<16x1xf32>
    %25 = arith.addf %24, %23 : vector<16x1xf32>
    %26 = arith.divf %24, %25 : vector<16x1xf32>
    %c0_17 = arith.constant 0 : index
    %c0_18 = arith.constant 0 : index
    %27 = vector.load %arg8[%c0_17, %c0_18] : memref<16x1xf32, #tpu.memory_space<vmem>>, vector<16x1xf32>
    tpu.vector_store %arg8[%c0_17, %c0_18], %26 {strides = array<i32>} : memref<16x1xf32, #tpu.memory_space<vmem>>, vector<16x1xf32>,
    return
  }
  func.func @transform_0(%arg0: i32) -> (i32, i32) {
    %c0_i32 = arith.constant 0 : i32
    %c0_i32_0 = arith.constant 0 : i32
    return %arg0, %c0_i32 : i32, i32
  }
  func.func @transform_1(%arg0: i32) -> (i32, i32) {
    %c0_i32 = arith.constant 0 : i32
    %c0_i32_0 = arith.constant 0 : i32
    return %arg0, %c0_i32 : i32, i32
  }
  func.func @transform_2(%arg0: i32) -> (i32, i32) {
    %c0_i32 = arith.constant 0 : i32
    %c0_i32_0 = arith.constant 0 : i32
    %c0_i32_1 = arith.constant 0 : i32
    return %c0_i32, %c0_i32_0 : i32, i32
  }
  func.func @transform_3(%arg0: i32) -> (i32, i32) {
    %c0_i32 = arith.constant 0 : i32
    %c0_i32_0 = arith.constant 0 : i32
    %c0_i32_1 = arith.constant 0 : i32
    return %c0_i32, %c0_i32_0 : i32, i32
  }
  func.func @transform_4(%arg0: i32) -> (i32, i32) {
    %c0_i32 = arith.constant 0 : i32
    %c0_i32_0 = arith.constant 0 : i32
    %c0_i32_1 = arith.constant 0 : i32
    return %c0_i32, %c0_i32_0 : i32, i32
  }
  func.func @transform_5(%arg0: i32) -> (i32, i32) {
    %c0_i32 = arith.constant 0 : i32
    %c0_i32_0 = arith.constant 0 : i32
    %c0_i32_1 = arith.constant 0 : i32
    return %c0_i32, %c0_i32_0 : i32, i32
  }
  func.func @transform_6(%arg0: i32) -> (i32, i32) {
    %c0_i32 = arith.constant 0 : i32
    %c0_i32_0 = arith.constant 0 : i32
    %c0_i32_1 = arith.constant 0 : i32
    return %c0_i32, %c0_i32_0 : i32, i32
  }
  func.func @transform_7(%arg0: i32) -> (i32, i32) {
    %c0_i32 = arith.constant 0 : i32
    %c0_i32_0 = arith.constant 0 : i32
    return %arg0, %c0_i32 : i32, i32
  }
}

</mosaic_0001>

<llo_original>
// kernel: tpu_custom_call.1
$region0: #{tpu_custom_call.1}
  #allocation0 [shape = 'u32[]', space=smem, size = 0x4, offset = 0x4, fixed_abs, tag = 'smem constant byte address 0x4 - core index']
  #allocation1 [shape = 'u32[144,128]{1,0:T(1,128)}', space=vmem, size = 0x12000, scoped, tag = 'internal scratch']
  #allocation2 [shape = 'f32[1,1]{1,0:T(1,128)S(1)}', space=vmem, size = 0x200, scoped, tag = 'scoped memory for tpu_custom_call.1']
  %s0 = inlined_call_operand.hbm [shape: f32[20,128], index: 0, kind: input, shape index: {}]
  %s1 = inlined_call_operand.hbm [shape: f32[20,128], index: 1, kind: input, shape index: {}]
  %s2 = inlined_call_operand.hbm [shape: bf16[128,128], index: 2, kind: input, shape index: {}]
  %s3 = inlined_call_operand.hbm [shape: bf16[128,128], index: 3, kind: input, shape index: {}]
  %s4 = inlined_call_operand.vmem [shape: f32[1,128], index: 4, kind: input, shape index: {}]
  %s5 = inlined_call_operand.vmem [shape: f32[1,128], index: 5, kind: input, shape index: {}]
  %s6 = inlined_call_operand.<no memory space> [shape: f32[1,1], index: 6, kind: input, shape index: {}]
  %s7 = inlined_call_operand.vmem [shape: f32[20,1], index: 7, kind: output, shape index: {}]
  %s8 = sld [smem:[#allocation0]]
  $region125: #{tpu_custom_call.1} parent=0
    _
  %s10 = ssub.s32 1, %s8
  %s11 = scalar_select 0, %s10, %s8
  %v12 = vstv %s6
  %13 = vst [vmem:[#allocation2] sm:$0x1] %v12
  $region1: #{tpu_custom_call.1} parent=0
    #allocation3 [shape = 'u8[16384]{0}', space=vmem, size = 0x4000, scoped, tag = 'input window, operand 0']
    #allocation4 [shape = 's32[2]{0}', space=sflag, size = 0x8, scoped, tag = 'scoped memory for tpu_custom_call.1']
    #allocation5 [shape = 'u8[16384]{0}', space=vmem, size = 0x4000, scoped, tag = 'input window, operand 1']
    #allocation6 [shape = 's32[2]{0}', space=sflag, size = 0x8, scoped, tag = 'scoped memory for tpu_custom_call.1']
    #allocation7 [shape = 'u8[32768]{0}', space=vmem, size = 0x8000, scoped, tag = 'input window, operand 2, single buffered']
    #allocation8 [shape = 'u8[32768]{0}', space=vmem, size = 0x8000, scoped, tag = 'input window, operand 3, single buffered']
    #allocation9 [shape = 's32[1]{0}', space=sflag, size = 0x4, scoped, tag = 'scoped memory for tpu_custom_call.1']
    #allocation10 [shape = 'u8[16384]{0}', space=vmem, size = 0x4000, scoped, tag = 'output window, operand 0']
    %14 = vsyncpa [#allocation4], 0
    %s15 = scalar_lea.sflag [#allocation4], 1
    %16 = vsyncpa %s15, 0
    %17 = vsyncpa [#allocation6], 0
    %s18 = scalar_lea.sflag [#allocation6], 1
    %19 = vsyncpa %s18, 0
    %20 = vsyncpa [#allocation9], 0
    loop: start=0, step=1, limit=4
    $region2: #{tpu_custom_call.1} parent=1 // loop_pre_header
      _
    $region3: #{tpu_custom_call.1} parent=1 // loop_header
      %s22 = sphi 0, %s26
      %p23 = scmp.ge.s32.totalorder %s22, 4
      %s32 = sphi 0, %s34
      %s35 = sphi 0, %s32
      %s36 = sphi 0, %s35
      %s52 = sphi 0, %s36
      %s58 = sphi 0, %s60
      %s61 = sphi 0, %s58
      %s62 = sphi 0, %s61
      %s78 = sphi 0, %s62
      %s82 = sphi 0, %s82
      %s84 = sphi 0, %s82
      %s85 = sphi 0, %s84
      %s99 = sphi 0, %s85
      %s103 = sphi 0, %s103
      %s105 = sphi 0, %s103
      %s106 = sphi 0, %s105
      %s120 = sphi 0, %s106
      %s124 = sphi 0, %s124
      %s126 = sphi 0, %s124
      %s127 = sphi 0, %s126
      %s141 = sphi 0, %s127
      %s145 = sphi 0, %s145
      %s147 = sphi 0, %s145
      %s148 = sphi 0, %s147
      %s162 = sphi 0, %s148
      %s166 = sphi 0, %s166
      %s168 = sphi 0, %s166
      %s169 = sphi 0, %s168
      %s183 = sphi 0, %s169
      %s189 = sphi 0, %s191
      %s192 = sphi 0, %s189
      %s193 = sphi 0, %s192
      %s209 = sphi 0, %s193
    $region4: #{tpu_custom_call.1} parent=1 // loop_header_branch
      %25 = sbr.rel (%p23) target = $region8
    $region5: #{tpu_custom_call.1} parent=1 // loop_body
      %s27 = ssub.s32 %s22, 1
      %s28 = ssub.s32 %s22, 2
      %s29 = sadd.s32 %s22, 1
      %s30 = ssub.s32 %s22, %s29
      %p31 = scmp.eq.s32.totalorder %s30, 0
      %s33 = sadd.s32 %s32, 1
      %s34 = scalar_select %p31, %s32, %s33
      %p37 = pneg %p31
      %p38 = scmp.eq.s32.totalorder %s22, 1
      %p39 = por %p37, %p38
      %p40 = scmp.ne.s32.totalorder %s32, %s35
      %p41 = scmp.eq.s32.totalorder %s22, 0
      %p42 = por %p40, %p41
      %p43 = scmp.ne.s32.totalorder %s32, %s35
      %p44 = scmp.eq.s32.totalorder %s27, 1
      %p45 = por %p43, %p44
      %p46 = scmp.ne.s32.totalorder %s35, %s36
      %p47 = scmp.eq.s32.totalorder %s27, 0
      %p48 = por %p46, %p47
      %p49 = scmp.ne.s32.totalorder %s35, %s36
      %p50 = scmp.eq.s32.totalorder %s28, 1
      %p51 = por %p49, %p50
      %p53 = scmp.ne.s32.totalorder %s36, %s52
      %p54 = scmp.eq.s32.totalorder %s28, 0
      %p55 = por %p53, %p54
      %s56 = ssub.s32 %s22, %s29
      %p57 = scmp.eq.s32.totalorder %s56, 0
      %s59 = sadd.s32 %s58, 1
      %s60 = scalar_select %p57, %s58, %s59
      %p63 = pneg %p57
      %p64 = scmp.eq.s32.totalorder %s22, 1
      %p65 = por %p63, %p64
      %p66 = scmp.ne.s32.totalorder %s58, %s61
      %p67 = scmp.eq.s32.totalorder %s22, 0
      %p68 = por %p66, %p67
      %p69 = scmp.ne.s32.totalorder %s58, %s61
      %p70 = scmp.eq.s32.totalorder %s27, 1
      %p71 = por %p69, %p70
      %p72 = scmp.ne.s32.totalorder %s61, %s62
      %p73 = scmp.eq.s32.totalorder %s27, 0
      %p74 = por %p72, %p73
      %p75 = scmp.ne.s32.totalorder %s61, %s62
      %p76 = scmp.eq.s32.totalorder %s28, 1
      %p77 = por %p75, %p76
      %p79 = scmp.ne.s32.totalorder %s62, %s78
      %p80 = scmp.eq.s32.totalorder %s28, 0
      %p81 = por %p79, %p80
      %s83 = sadd.s32 %s82, 1
      %p86 = scmp.eq.s32.totalorder %s22, 1
      %p87 = scmp.ne.s32.totalorder %s82, %s84
      %p88 = scmp.eq.s32.totalorder %s22, 0
      %p89 = por %p87, %p88
      %p90 = scmp.ne.s32.totalorder %s82, %s84
      %p91 = scmp.eq.s32.totalorder %s27, 1
      %p92 = por %p90, %p91
      %p93 = scmp.ne.s32.totalorder %s84, %s85
      %p94 = scmp.eq.s32.totalorder %s27, 0
      %p95 = por %p93, %p94
      %p96 = scmp.ne.s32.totalorder %s84, %s85
      %p97 = scmp.eq.s32.totalorder %s28, 1
      %p98 = por %p96, %p97
      %p100 = scmp.ne.s32.totalorder %s85, %s99
      %p101 = scmp.eq.s32.totalorder %s28, 0
      %p102 = por %p100, %p101
      %s104 = sadd.s32 %s103, 1
      %p107 = scmp.eq.s32.totalorder %s22, 1
      %p108 = scmp.ne.s32.totalorder %s103, %s105
      %p109 = scmp.eq.s32.totalorder %s22, 0
      %p110 = por %p108, %p109
      %p111 = scmp.ne.s32.totalorder %s103, %s105
      %p112 = scmp.eq.s32.totalorder %s27, 1
      %p113 = por %p111, %p112
      %p114 = scmp.ne.s32.totalorder %s105, %s106
      %p115 = scmp.eq.s32.totalorder %s27, 0
      %p116 = por %p114, %p115
      %p117 = scmp.ne.s32.totalorder %s105, %s106
      %p118 = scmp.eq.s32.totalorder %s28, 1
      %p119 = por %p117, %p118
      %p121 = scmp.ne.s32.totalorder %s106, %s120
      %p122 = scmp.eq.s32.totalorder %s28, 0
      %p123 = por %p121, %p122
      %s125 = sadd.s32 %s124, 1
      %p128 = scmp.eq.s32.totalorder %s22, 1
      %p129 = scmp.ne.s32.totalorder %s124, %s126
      %p130 = scmp.eq.s32.totalorder %s22, 0
      %p131 = por %p129, %p130
      %p132 = scmp.ne.s32.totalorder %s124, %s126
      %p133 = scmp.eq.s32.totalorder %s27, 1
      %p134 = por %p132, %p133
      %p135 = scmp.ne.s32.totalorder %s126, %s127
      %p136 = scmp.eq.s32.totalorder %s27, 0
      %p137 = por %p135, %p136
      %p138 = scmp.ne.s32.totalorder %s126, %s127
      %p139 = scmp.eq.s32.totalorder %s28, 1
      %p140 = por %p138, %p139
      %p142 = scmp.ne.s32.totalorder %s127, %s141
      %p143 = scmp.eq.s32.totalorder %s28, 0
      %p144 = por %p142, %p143
      %s146 = sadd.s32 %s145, 1
      %p149 = scmp.eq.s32.totalorder %s22, 1
      %p150 = scmp.ne.s32.totalorder %s145, %s147
      %p151 = scmp.eq.s32.totalorder %s22, 0
      %p152 = por %p150, %p151
      %p153 = scmp.ne.s32.totalorder %s145, %s147
      %p154 = scmp.eq.s32.totalorder %s27, 1
      %p155 = por %p153, %p154
      %p156 = scmp.ne.s32.totalorder %s147, %s148
      %p157 = scmp.eq.s32.totalorder %s27, 0
      %p158 = por %p156, %p157
      %p159 = scmp.ne.s32.totalorder %s147, %s148
      %p160 = scmp.eq.s32.totalorder %s28, 1
      %p161 = por %p159, %p160
      %p163 = scmp.ne.s32.totalorder %s148, %s162
      %p164 = scmp.eq.s32.totalorder %s28, 0
      %p165 = por %p163, %p164
      %s167 = sadd.s32 %s166, 1
      %p170 = scmp.eq.s32.totalorder %s22, 1
      %p171 = scmp.ne.s32.totalorder %s166, %s168
      %p172 = scmp.eq.s32.totalorder %s22, 0
      %p173 = por %p171, %p172
      %p174 = scmp.ne.s32.totalorder %s166, %s168
      %p175 = scmp.eq.s32.totalorder %s27, 1
      %p176 = por %p174, %p175
      %p177 = scmp.ne.s32.totalorder %s168, %s169
      %p178 = scmp.eq.s32.totalorder %s27, 0
      %p179 = por %p177, %p178
      %p180 = scmp.ne.s32.totalorder %s168, %s169
      %p181 = scmp.eq.s32.totalorder %s28, 1
      %p182 = por %p180, %p181
      %p184 = scmp.ne.s32.totalorder %s169, %s183
      %p185 = scmp.eq.s32.totalorder %s28, 0
      %p186 = por %p184, %p185
      %s187 = ssub.s32 %s22, %s29
      %p188 = scmp.eq.s32.totalorder %s187, 0
      %s190 = sadd.s32 %s189, 1
      %s191 = scalar_select %p188, %s189, %s190
      %p194 = pneg %p188
      %p195 = scmp.eq.s32.totalorder %s22, 1
      %p196 = por %p194, %p195
      %p197 = scmp.ne.s32.totalorder %s189, %s192
      %p198 = scmp.eq.s32.totalorder %s22, 0
      %p199 = por %p197, %p198
      %p200 = scmp.ne.s32.totalorder %s189, %s192
      %p201 = scmp.eq.s32.totalorder %s27, 1
      %p202 = por %p200, %p201
      %p203 = scmp.ne.s32.totalorder %s192, %s193
      %p204 = scmp.eq.s32.totalorder %s27, 0
      %p205 = por %p203, %p204
      %p206 = scmp.ne.s32.totalorder %s192, %s193
      %p207 = scmp.eq.s32.totalorder %s28, 1
      %p208 = por %p206, %p207
      %p210 = scmp.ne.s32.totalorder %s193, %s209
      %p211 = scmp.eq.s32.totalorder %s28, 0
      %p212 = por %p210, %p211
      %p213 = scmp.le.s32.totalorder 1, %s22
      %p214 = scmp.lt.s32.totalorder %s22, 3
      %p215 = pnand %p213, %p214
      %p216 = pneg %p215
      // Predicated region
      $region9: #{tpu_custom_call.1} parent=5 // pred_check
        _
      $region10: #{tpu_custom_call.1} parent=5 // pred_check_branch
        %218 = sbr.rel (%p215) target = $region12
      $region11: #{tpu_custom_call.1} parent=5 // pred_region
        %s219 = ssub.s32 %s22, 1
        // Predicated region
        $region13: #{tpu_custom_call.1} parent=11 // pred_check
          %p220 = pneg %p95
        $region14: #{tpu_custom_call.1} parent=11 // pred_check_branch
          %222 = sbr.rel (%p220) target = $region16
        $region15: #{tpu_custom_call.1} parent=11 // pred_region
          %s224 = ssub.s32 1024, 1024
          %225 = vsyncadd [#allocation6], %s224
          %s226 = sshll.u32 [#allocation7], 4
          %s227 = int_to_ptr.vmem [resolvable:$true] %s226
          %232 = dma.hbm_to_vmem [thread:$0]  %s2, 1024, %s227, [#allocation6], 64, 64, 4
        $region16: #{tpu_custom_call.1} parent=11 // pred_fallthru
          _
        // Predicated region
        $region17: #{tpu_custom_call.1} parent=11 // pred_check
          %p233 = pneg %p116
        $region18: #{tpu_custom_call.1} parent=11 // pred_check_branch
          %235 = sbr.rel (%p233) target = $region20
        $region19: #{tpu_custom_call.1} parent=11 // pred_region
          %s237 = ssub.s32 1024, 1024
          %238 = vsyncadd [#allocation9], %s237
          %s239 = sshll.u32 [#allocation8], 4
          %s240 = int_to_ptr.vmem [resolvable:$true] %s239
          %245 = dma.hbm_to_vmem [thread:$0]  %s3, 1024, %s240, [#allocation9], 64, 64, 4
        $region20: #{tpu_custom_call.1} parent=11 // pred_fallthru
          _
        // Predicated region
        $region21: #{tpu_custom_call.1} parent=11 // pred_check
          %p246 = pneg %p137
        $region22: #{tpu_custom_call.1} parent=11 // pred_check_branch
          %248 = sbr.rel (%p246) target = $region24
        $region23: #{tpu_custom_call.1} parent=11 // pred_region
          _
        $region24: #{tpu_custom_call.1} parent=11 // pred_fallthru
          _
        // Predicated region
        $region25: #{tpu_custom_call.1} parent=11 // pred_check
          %p249 = pneg %p158
        $region26: #{tpu_custom_call.1} parent=11 // pred_check_branch
          %251 = sbr.rel (%p249) target = $region28
        $region27: #{tpu_custom_call.1} parent=11 // pred_region
          _
        $region28: #{tpu_custom_call.1} parent=11 // pred_fallthru
          _
        // Predicated region
        $region29: #{tpu_custom_call.1} parent=11 // pred_check
          %p252 = pneg %p179
        $region30: #{tpu_custom_call.1} parent=11 // pred_check_branch
          %254 = sbr.rel (%p252) target = $region32
        $region31: #{tpu_custom_call.1} parent=11 // pred_region
          _
        $region32: #{tpu_custom_call.1} parent=11 // pred_fallthru
          _
      $region12: #{tpu_custom_call.1} parent=5 // pred_fallthru
        _
      %p255 = scmp.lt.s32.totalorder %s22, 2
      // Predicated region
      $region33: #{tpu_custom_call.1} parent=5 // pred_check
        %p256 = pneg %p255
      $region34: #{tpu_custom_call.1} parent=5 // pred_check_branch
        %258 = sbr.rel (%p256) target = $region36
      $region35: #{tpu_custom_call.1} parent=5 // pred_region
        // Predicated region
        $region37: #{tpu_custom_call.1} parent=35 // pred_check
          %p259 = pneg %p42
        $region38: #{tpu_custom_call.1} parent=35 // pred_check_branch
          %261 = sbr.rel (%p259) target = $region40
        $region39: #{tpu_custom_call.1} parent=35 // pred_region
          %s262 = sand.u32 %s32, 1
          %s263 = scalar_lea.sflag [#allocation4], %s262
          %s264 = sand.u32 %s32, 1
          %s265 = smul.addr %s264, 16
          %s266 = scalar_lea.vmem [#allocation3], %s265
          %s267 = smul.u32 2, %s22
          %s268 = ssub.s32 3, %s267
          %p269 = scmp.lt.s32.totalorder %s268, 2
          %s270 = scalar_select %p269, %s268, 2
          %s271 = smul.u32 128, %s270
          %s273 = ssub.s32 256, %s271
          %274 = vsyncadd %s263, %s273
          %p275 = scmp.ne.s32.totalorder 0, %s271
          %s276 = smul.addr %s267, 128
          %s277 = scalar_lea.hbm %s0, %s276
          %s278 = smul.u32 8, %s270
          %s279 = sshll.u32 %s266, 4
          %s280 = int_to_ptr.vmem [resolvable:$true] %s279
          %s281 = sshll.u32 %s278, 4
          %285 = dma.hbm_to_vmem [thread:$0]  (%p275), %s277, %s281, %s280, %s263, 128, 128, 8
        $region40: #{tpu_custom_call.1} parent=35 // pred_fallthru
          _
        // Predicated region
        $region41: #{tpu_custom_call.1} parent=35 // pred_check
          %p286 = pneg %p68
        $region42: #{tpu_custom_call.1} parent=35 // pred_check_branch
          %288 = sbr.rel (%p286) target = $region44
        $region43: #{tpu_custom_call.1} parent=35 // pred_region
          %s289 = sand.u32 %s22, 1
          %s290 = scalar_lea.sflag [#allocation6], %s289
          %s291 = sand.u32 %s58, 1
          %s292 = smul.addr %s291, 16
          %s293 = scalar_lea.vmem [#allocation5], %s292
          %s294 = smul.u32 2, %s22
          %s295 = ssub.s32 3, %s294
          %p296 = scmp.lt.s32.totalorder %s295, 2
          %s297 = scalar_select %p296, %s295, 2
          %s298 = smul.u32 128, %s297
          %s300 = ssub.s32 256, %s298
          %301 = vsyncadd %s290, %s300
          %p302 = scmp.ne.s32.totalorder 0, %s298
          %s303 = smul.addr %s294, 128
          %s304 = scalar_lea.hbm %s1, %s303
          %s305 = smul.u32 8, %s297
          %s306 = sshll.u32 %s293, 4
          %s307 = int_to_ptr.vmem [resolvable:$true] %s306
          %s308 = sshll.u32 %s305, 4
          %312 = dma.hbm_to_vmem [thread:$0]  (%p302), %s304, %s308, %s307, %s290, 128, 128, 8
        $region44: #{tpu_custom_call.1} parent=35 // pred_fallthru
          _
      $region36: #{tpu_custom_call.1} parent=5 // pred_fallthru
        _
      %p313 = scmp.le.s32.totalorder 1, %s22
      %p314 = scmp.lt.s32.totalorder %s22, 3
      %p315 = pnand %p313, %p314
      %p316 = pneg %p315
      // Predicated region
      $region45: #{tpu_custom_call.1} parent=5 // pred_check
        _
      $region46: #{tpu_custom_call.1} parent=5 // pred_check_branch
        %318 = sbr.rel (%p315) target = $region48
      $region47: #{tpu_custom_call.1} parent=5 // pred_region
        %s319 = ssub.s32 %s22, 1
        %s320 = sand.u32 %s35, 1
        %s321 = scalar_lea.sflag [#allocation4], %s320
        %s322 = sand.u32 %s35, 1
        %s323 = smul.addr %s322, 16
        %s324 = scalar_lea.vmem [#allocation3], %s323
        // Predicated region
        $region49: #{tpu_custom_call.1} parent=47 // pred_check
          %p325 = pneg %p48
        $region50: #{tpu_custom_call.1} parent=47 // pred_check_branch
          %327 = sbr.rel (%p325) target = $region52
        $region51: #{tpu_custom_call.1} parent=47 // pred_region
          %328 = dma.done %s321, 256
        $region52: #{tpu_custom_call.1} parent=47 // pred_fallthru
          _
        %s329 = sand.u32 %s27, 1
        %s330 = scalar_lea.sflag [#allocation6], %s329
        %s331 = sand.u32 %s61, 1
        %s332 = smul.addr %s331, 16
        %s333 = scalar_lea.vmem [#allocation5], %s332
        // Predicated region
        $region53: #{tpu_custom_call.1} parent=47 // pred_check
          %p334 = pneg %p74
        $region54: #{tpu_custom_call.1} parent=47 // pred_check_branch
          %336 = sbr.rel (%p334) target = $region56
        $region55: #{tpu_custom_call.1} parent=47 // pred_region
          %337 = dma.done %s330, 256
        $region56: #{tpu_custom_call.1} parent=47 // pred_fallthru
          _
        // Predicated region
        $region57: #{tpu_custom_call.1} parent=47 // pred_check
          %p338 = pneg %p95
        $region58: #{tpu_custom_call.1} parent=47 // pred_check_branch
          %340 = sbr.rel (%p338) target = $region60
        $region59: #{tpu_custom_call.1} parent=47 // pred_region
          %341 = dma.done [#allocation6], 1024
        $region60: #{tpu_custom_call.1} parent=47 // pred_fallthru
          _
        // Predicated region
        $region61: #{tpu_custom_call.1} parent=47 // pred_check
          %p342 = pneg %p116
        $region62: #{tpu_custom_call.1} parent=47 // pred_check_branch
          %344 = sbr.rel (%p342) target = $region64
        $region63: #{tpu_custom_call.1} parent=47 // pred_region
          %345 = dma.done [#allocation9], 1024
        $region64: #{tpu_custom_call.1} parent=47 // pred_fallthru
          _
        %s346 = sand.u32 %s35, 1
        %s347 = scalar_lea.sflag [#allocation4], %s346
        %s348 = sand.u32 %s35, 1
        %s349 = smul.addr %s348, 16
        %s350 = scalar_lea.vmem [#allocation3], %s349
        %p351 = pneg %p48
        %p352 = pneg %p45
        %s353 = sand.u32 %s27, 1
        %s354 = scalar_lea.sflag [#allocation6], %s353
        %s355 = sand.u32 %s61, 1
        %s356 = smul.addr %s355, 16
        %s357 = scalar_lea.vmem [#allocation5], %s356
        %p358 = pneg %p74
        %p359 = pneg %p71
        %p360 = pneg %p95
        %p361 = pneg %p92
        %p362 = pneg %p116
        %p363 = pneg %p113
        %p364 = pneg %p137
        %p365 = pneg %p134
        %p366 = pneg %p158
        %p367 = pneg %p155
        %p368 = pneg %p179
        %p369 = pneg %p176
        %p370 = pneg %p205
        %p371 = pneg %p202
        %s372 = sand.u32 %s192, 1
        %s373 = sand.u32 %s192, 1
        %s374 = smul.addr %s373, 16
        %s375 = scalar_lea.vmem [#allocation10], %s374
        %s376 = smul.u32 2, %s27
        %s377 = ssub.s32 3, %s376
        %p378 = scmp.lt.s32.totalorder %s377, 2
        %s379 = scalar_select %p378, %s377, 2
        %s380 = smul.u32 128, %s379
        %s381 = smul.u32 2, %s27
        %s382 = ssub.s32 3, %s381
        %p383 = scmp.lt.s32.totalorder %s382, 2
        %s384 = scalar_select %p383, %s382, 2
        %s385 = smul.u32 128, %s384
        %s386 = smul.u32 2, %s27
        %s387 = ssub.s32 3, %s386
        %p388 = scmp.lt.s32.totalorder %s387, 2
        %s389 = scalar_select %p388, %s387, 2
        %s390 = smul.u32 128, %s389
        %v392 = vld [vmem:[%s324] sm:$0xff]
        %v393 = vld [vmem:[%s324 + $0x8] sm:$0xff]
        %v394 = vpack.c.bf16 %v393, %v392
        %v395 = vld [vmem:[%s333] sm:$0xff]
        %v396 = vld [vmem:[%s333 + $0x8] sm:$0xff]
        %v397 = vpack.c.bf16 %v396, %v395
        %v398 = vld [vmem:[#allocation7] sm:$0xf]
        %v399 = vld [vmem:[#allocation7 + $0x4] sm:$0xf]
        %v400 = vld [vmem:[#allocation7 + $0x8] sm:$0xf]
        %v401 = vld [vmem:[#allocation7 + $0xc] sm:$0xf]
        %v402 = vld [vmem:[#allocation7 + $0x10] sm:$0xf]
        %v403 = vld [vmem:[#allocation7 + $0x14] sm:$0xf]
        %v404 = vld [vmem:[#allocation7 + $0x18] sm:$0xf]
        %v405 = vld [vmem:[#allocation7 + $0x1c] sm:$0xf]
        %v406 = vld [vmem:[#allocation7 + $0x20] sm:$0xf]
        %v407 = vld [vmem:[#allocation7 + $0x24] sm:$0xf]
        %v408 = vld [vmem:[#allocation7 + $0x28] sm:$0xf]
        %v409 = vld [vmem:[#allocation7 + $0x2c] sm:$0xf]
        %v410 = vld [vmem:[#allocation7 + $0x30] sm:$0xf]
        %v411 = vld [vmem:[#allocation7 + $0x34] sm:$0xf]
        %v412 = vld [vmem:[#allocation7 + $0x38] sm:$0xf]
        %v413 = vld [vmem:[#allocation7 + $0x3c] sm:$0xf]
        %v414 = vld [vmem:[#allocation8] sm:$0xf]
        %v415 = vld [vmem:[#allocation8 + $0x4] sm:$0xf]
        %v416 = vld [vmem:[#allocation8 + $0x8] sm:$0xf]
        %v417 = vld [vmem:[#allocation8 + $0xc] sm:$0xf]
        %v418 = vld [vmem:[#allocation8 + $0x10] sm:$0xf]
        %v419 = vld [vmem:[#allocation8 + $0x14] sm:$0xf]
        %v420 = vld [vmem:[#allocation8 + $0x18] sm:$0xf]
        %v421 = vld [vmem:[#allocation8 + $0x1c] sm:$0xf]
        %v422 = vld [vmem:[#allocation8 + $0x20] sm:$0xf]
        %v423 = vld [vmem:[#allocation8 + $0x24] sm:$0xf]
        %v424 = vld [vmem:[#allocation8 + $0x28] sm:$0xf]
        %v425 = vld [vmem:[#allocation8 + $0x2c] sm:$0xf]
        %v426 = vld [vmem:[#allocation8 + $0x30] sm:$0xf]
        %v427 = vld [vmem:[#allocation8 + $0x34] sm:$0xf]
        %v428 = vld [vmem:[#allocation8 + $0x38] sm:$0xf]
        %v429 = vld [vmem:[#allocation8 + $0x3c] sm:$0xf]
        %v446 = vunpack.c.l.b16 %v414
        %v447 = vunpack.c.l.b16 %v415
        %v448 = vunpack.c.l.b16 %v416
        %v449 = vunpack.c.l.b16 %v417
        %v450 = vunpack.c.l.b16 %v418
        %v451 = vunpack.c.l.b16 %v419
        %v452 = vunpack.c.l.b16 %v420
        %v453 = vunpack.c.l.b16 %v421
        %v454 = vunpack.c.l.b16 %v422
        %v455 = vunpack.c.l.b16 %v423
        %v456 = vunpack.c.l.b16 %v424
        %v457 = vunpack.c.l.b16 %v425
        %v458 = vunpack.c.l.b16 %v426
        %v459 = vunpack.c.l.b16 %v427
        %v460 = vunpack.c.l.b16 %v428
        %v461 = vunpack.c.l.b16 %v429
        %v462 = vpack.c.b16 %v447, %v446
        %v463 = vpack.c.b16 %v449, %v448
        %v464 = vpack.c.b16 %v451, %v450
        %v465 = vpack.c.b16 %v453, %v452
        %v466 = vpack.c.b16 %v455, %v454
        %v467 = vpack.c.b16 %v457, %v456
        %v468 = vpack.c.b16 %v459, %v458
        %v469 = vpack.c.b16 %v461, %v460
        %478 = vmatprep.subr.bf16.mxu0 0
        %479 = vmatpush1.bf16.msra.mxu0 %v469
        %480 = vmatprep.subr.bf16.mxu0 0
        %481 = vmatpush1.bf16.msra.mxu0 %v468
        %482 = vmatprep.subr.bf16.mxu0 0
        %483 = vmatpush1.bf16.msra.mxu0 %v467
        %484 = vmatprep.subr.bf16.mxu0 0
        %485 = vmatpush1.bf16.msra.mxu0 %v466
        %486 = vmatprep.subr.bf16.mxu0 0
        %487 = vmatpush1.bf16.msra.mxu0 %v465
        %488 = vmatprep.subr.bf16.mxu0 0
        %489 = vmatpush1.bf16.msra.mxu0 %v464
        %490 = vmatprep.subr.bf16.mxu0 0
        %491 = vmatpush1.bf16.msra.mxu0 %v463
        %492 = vmatprep.subr.bf16.mxu0 0
        %493 = vmatpush1.bf16.msra.mxu0 %v462
        %494 = vmatprep.subr.bf16.mxu0 0
        %495 = vmatpush2.bf16.msra.mxu0 0
        %496 = vmatprep.subr.bf16.mxu0 0
        %497 = vmatpush2.bf16.msra.mxu0 0
        %498 = vmatprep.subr.bf16.mxu0 0
        %499 = vmatpush2.bf16.msra.mxu0 0
        %500 = vmatprep.subr.bf16.mxu0 0
        %501 = vmatpush2.bf16.msra.mxu0 0
        %502 = vmatprep.subr.bf16.mxu0 0
        %503 = vmatpush2.bf16.msra.mxu0 0
        %504 = vmatprep.subr.bf16.mxu0 0
        %505 = vmatpush2.bf16.msra.mxu0 0
        %506 = vmatprep.subr.bf16.mxu0 0
        %507 = vmatpush2.bf16.msra.mxu0 0
        %508 = vmatprep.subr.bf16.mxu0 0
        %509 = vmatpush2.bf16.msra.mxu0 0
        %510 = vmatprep.mubr.bf16.mxu0 0
        %511 = vmatmul.mubr.bf16.gmra.mxu0 %v397
        %v512 = vpop.f32.mrf.mxu0
        %v513 = vadd.f32 0.0, %v512
        %v514 = vpop.f32.mrf.mxu0
        %v515 = vpop.f32.mrf.mxu0
        %v516 = vadd.f32 0.0, %v515
        %v517 = vpop.f32.mrf.mxu0
        %518 = vdwg.mxu0
        %v535 = vunpack.c.l.b16 %v398
        %v536 = vunpack.c.l.b16 %v399
        %v537 = vunpack.c.l.b16 %v400
        %v538 = vunpack.c.l.b16 %v401
        %v539 = vunpack.c.l.b16 %v402
        %v540 = vunpack.c.l.b16 %v403
        %v541 = vunpack.c.l.b16 %v404
        %v542 = vunpack.c.l.b16 %v405
        %v543 = vunpack.c.l.b16 %v406
        %v544 = vunpack.c.l.b16 %v407
        %v545 = vunpack.c.l.b16 %v408
        %v546 = vunpack.c.l.b16 %v409
        %v547 = vunpack.c.l.b16 %v410
        %v548 = vunpack.c.l.b16 %v411
        %v549 = vunpack.c.l.b16 %v412
        %v550 = vunpack.c.l.b16 %v413
        %v551 = vpack.c.b16 %v536, %v535
        %v552 = vpack.c.b16 %v538, %v537
        %v553 = vpack.c.b16 %v540, %v539
        %v554 = vpack.c.b16 %v542, %v541
        %v555 = vpack.c.b16 %v544, %v543
        %v556 = vpack.c.b16 %v546, %v545
        %v557 = vpack.c.b16 %v548, %v547
        %v558 = vpack.c.b16 %v550, %v549
        %567 = vmatprep.subr.bf16.mxu0 0
        %568 = vmatpush1.bf16.msra.mxu0 %v558
        %569 = vmatprep.subr.bf16.mxu0 0
        %570 = vmatpush1.bf16.msra.mxu0 %v557
        %571 = vmatprep.subr.bf16.mxu0 0
        %572 = vmatpush1.bf16.msra.mxu0 %v556
        %573 = vmatprep.subr.bf16.mxu0 0
        %574 = vmatpush1.bf16.msra.mxu0 %v555
        %575 = vmatprep.subr.bf16.mxu0 0
        %576 = vmatpush1.bf16.msra.mxu0 %v554
        %577 = vmatprep.subr.bf16.mxu0 0
        %578 = vmatpush1.bf16.msra.mxu0 %v553
        %579 = vmatprep.subr.bf16.mxu0 0
        %580 = vmatpush1.bf16.msra.mxu0 %v552
        %581 = vmatprep.subr.bf16.mxu0 0
        %582 = vmatpush1.bf16.msra.mxu0 %v551
        %583 = vmatprep.subr.bf16.mxu0 0
        %584 = vmatpush2.bf16.msra.mxu0 0
        %585 = vmatprep.subr.bf16.mxu0 0
        %586 = vmatpush2.bf16.msra.mxu0 0
        %587 = vmatprep.subr.bf16.mxu0 0
        %588 = vmatpush2.bf16.msra.mxu0 0
        %589 = vmatprep.subr.bf16.mxu0 0
        %590 = vmatpush2.bf16.msra.mxu0 0
        %591 = vmatprep.subr.bf16.mxu0 0
        %592 = vmatpush2.bf16.msra.mxu0 0
        %593 = vmatprep.subr.bf16.mxu0 0
        %594 = vmatpush2.bf16.msra.mxu0 0
        %595 = vmatprep.subr.bf16.mxu0 0
        %596 = vmatpush2.bf16.msra.mxu0 0
        %597 = vmatprep.subr.bf16.mxu0 0
        %598 = vmatpush2.bf16.msra.mxu0 0
        %599 = vmatprep.mubr.bf16.mxu0 0
        %600 = vmatmul.mubr.bf16.gmra.mxu0 %v394
        %v601 = vpop.f32.mrf.mxu0
        %v602 = vadd.f32 %v513, %v601
        %v603 = vpop.f32.mrf.mxu0
        %v604 = vpop.f32.mrf.mxu0
        %v605 = vadd.f32 %v516, %v604
        %v606 = vpop.f32.mrf.mxu0
        %607 = vdwg.mxu0
        %v608 = vld [vmem:[%s4] sm:$0x1]
        %v610 = vlaneseq
        %v611 = vshrl.u32 %v610, 7
        %v612 = vsub.s32 0, %v611
        %v613 = vrot.slane %v608, %v612
        %v615 = vadd.f32 %v602, %v613
        %v616 = vadd.f32 %v605, %v613
        %v617 = vmax.f32 %v615, 0.0
        %v618 = vmax.f32 %v616, 0.0
        %v619 = vld [vmem:[%s5] sm:$0x1]
        %v621 = vlaneseq
        %v622 = vshrl.u32 %v621, 7
        %v623 = vsub.s32 0, %v622
        %v624 = vrot.slane %v619, %v623
        %v626 = vmul.f32 %v617, %v624
        %v627 = vmul.f32 %v618, %v624
        %628 = vadd.xlane.f32.xlu0 %v626
        %v629 = vpop.xlane.xlu0 %628
        %630 = vadd.xlane.f32.xlu0 %v627
        %v631 = vpop.xlane.xlu0 %630
        %v632 = vld [vmem:[#allocation2] sm:$0x1]
        %v634 = vlaneseq
        %v635 = vshrl.u32 %v634, 7
        %v636 = vsub.s32 0, %v635
        %v637 = vrot.slane %v632, %v636
        %v639 = vadd.f32 %v629, %v637
        %v640 = vadd.f32 %v631, %v637
        %v641 = vxor.u32 %v639, 2147483648
        %v642 = vxor.u32 %v640, 2147483648
        %v643 = vmul.f32 %v641, 1.442695
        %v644 = vpow.pop %v643
        %v645 = vmul.f32 %v642, 1.442695
        %v646 = vpow.pop %v645
        %v647 = vadd.f32 %v644, 1.0
        %v648 = vadd.f32 %v646, 1.0
        %v649 = vrcp.pop %v647
        %v650 = vmul.f32 1.0, %v649
        %v651 = vrcp.pop %v648
        %v652 = vmul.f32 1.0, %v651
        %vm653 = vcmask 7168
        %654 = vst.msk [vmem:[%s375] sm:$0xff] %vm653, %v650
        %655 = vst.msk [vmem:[%s375 + $0x8] sm:$0xff] %vm653, %v652
        %s656 = sand.u32 %s192, 1
        %s657 = sand.u32 %s192, 1
        %s658 = smul.addr %s657, 16
        %s659 = scalar_lea.vmem [#allocation10], %s658
        // Predicated region
        $region65: #{tpu_custom_call.1} parent=47 // pred_check
          %p660 = pneg %p202
        $region66: #{tpu_custom_call.1} parent=47 // pred_check_branch
          %662 = sbr.rel (%p660) target = $region68
        $region67: #{tpu_custom_call.1} parent=47 // pred_region
          %s663 = smul.u32 2, %s27
          %s664 = ssub.s32 3, %s663
          %p665 = scmp.lt.s32.totalorder %s664, 2
          %s666 = scalar_select %p665, %s664, 2
          %s667 = smul.u32 128, %s666
          %p668 = scmp.ne.s32.totalorder 0, %s667
          %s669 = smul.addr %s663, 8
          %s670 = scalar_lea.vmem %s7, %s669
          // Predicated region
          $region69: #{tpu_custom_call.1} parent=67 // pred_check
            %p671 = pneg %p668
          $region70: #{tpu_custom_call.1} parent=67 // pred_check_branch
            %673 = sbr.rel (%p671) target = $region72
          $region71: #{tpu_custom_call.1} parent=67 // pred_region
            // Predicated region
            $region73: #{tpu_custom_call.1} parent=71 // pred_check
              _
            $region74: #{tpu_custom_call.1} parent=71 // pred_check_branch
              %675 = sbr.rel (0) target = $region76
            $region75: #{tpu_custom_call.1} parent=71 // pred_region
              // Predicated region
              $region95: #{tpu_custom_call.1} parent=75 // pred_check
                _
              $region96: #{tpu_custom_call.1} parent=75 // pred_check_branch
                %727 = sbr.rel (0) target = $region98
              $region97: #{tpu_custom_call.1} parent=75 // pred_region
                %s728 = sshrl.u32 %s666, 1
                // While loop
                $region99: #{tpu_custom_call.1} parent=97 // loop_pre_header
                  _
                $region100: #{tpu_custom_call.1} parent=97 // loop_header
                  %s730 = sphi 0, %s732
                  %p731 = scmp.ge.s32.totalorder %s730, %s728
                  %s735 = sphi 0, %s744
                  %s736 = sphi %s659, %s747
                  %s737 = sphi %s670, %s748
                $region101: #{tpu_custom_call.1} parent=97 // loop_header_branch
                  %734 = sbr.rel (%p731) target = $region105
                $region102: #{tpu_custom_call.1} parent=97 // loop_body
                  %v738 = vld [vmem:[%s736] sm:$0xff]
                  %739 = vst [vmem:[%s737] sm:$0xff] %v738
                  %v740 = vld [vmem:[%s736 + $0x8] sm:$0xff]
                  %741 = vst [vmem:[%s737 + $0x8] sm:$0xff] %v740
                  %s742 = sadd.s32 1, %s735
                  %p743 = scmp.ge.s32.totalorder %s742, %s728
                  %s744 = scalar_select %p743, 0, %s742
                  %s745 = smul.u32 %s744, 16
                  %s746 = smul.u32 %s744, 16
                  %s747 = scalar_lea.vmem %s659, %s745 [#allocation10]
                  %s748 = scalar_lea.vmem %s670, %s746
                $region103: #{tpu_custom_call.1} parent=97 // loop_footer
                  %s732 = sadd.s32 %s730, 1
                $region104: #{tpu_custom_call.1} parent=97 // loop_footer_branch
                  %729 = sbr.rel target = $region100
                $region105: #{tpu_custom_call.1} parent=97 // loop_exit
                  _
                %s749 = sshrl.u32 %s666, 1
                %s750 = sand.u32 %s666, 1
                %s751 = smul.u32 %s749, 2
                %s752 = smul.u32 8, %s751
                %s753 = scalar_lea.vmem %s659, %s752 [#allocation10]
                %s754 = smul.u32 8, %s751
                %s755 = scalar_lea.vmem %s670, %s754
                // While loop
                $region106: #{tpu_custom_call.1} parent=97 // loop_pre_header
                  _
                $region107: #{tpu_custom_call.1} parent=97 // loop_header
                  %s757 = sphi 0, %s759
                  %p758 = scmp.ge.s32.totalorder %s757, %s750
                  %s762 = sphi 0, %s769
                  %s763 = sphi %s753, %s772
                  %s764 = sphi %s755, %s773
                $region108: #{tpu_custom_call.1} parent=97 // loop_header_branch
                  %761 = sbr.rel (%p758) target = $region112
                $region109: #{tpu_custom_call.1} parent=97 // loop_body
                  %v765 = vld [vmem:[%s763] sm:$0xff]
                  %766 = vst [vmem:[%s764] sm:$0xff] %v765
                  %s767 = sadd.s32 1, %s762
                  %p768 = scmp.ge.s32.totalorder %s767, %s750
                  %s769 = scalar_select %p768, 0, %s767
                  %s770 = smul.u32 %s769, 8
                  %s771 = smul.u32 %s769, 8
                  %s772 = scalar_lea.vmem %s753, %s770 [#allocation10]
                  %s773 = scalar_lea.vmem %s755, %s771
                $region110: #{tpu_custom_call.1} parent=97 // loop_footer
                  %s759 = sadd.s32 %s757, 1
                $region111: #{tpu_custom_call.1} parent=97 // loop_footer_branch
                  %756 = sbr.rel target = $region107
                $region112: #{tpu_custom_call.1} parent=97 // loop_exit
                  _
              $region98: #{tpu_custom_call.1} parent=75 // pred_fallthru
                _
              // Predicated region
              $region113: #{tpu_custom_call.1} parent=75 // pred_check
                _
              $region114: #{tpu_custom_call.1} parent=75 // pred_check_branch
                %775 = sbr.rel target = $region116
              $region115: #{tpu_custom_call.1} parent=75 // pred_region
                _
              $region116: #{tpu_custom_call.1} parent=75 // pred_fallthru
                _
            $region76: #{tpu_custom_call.1} parent=71 // pred_fallthru
              _
            // Predicated region
            $region77: #{tpu_custom_call.1} parent=71 // pred_check
              _
            $region78: #{tpu_custom_call.1} parent=71 // pred_check_branch
              %677 = sbr.rel target = $region80
            $region79: #{tpu_custom_call.1} parent=71 // pred_region
              %s679 = ssub.s32 256, 1
              %s680 = sshrl.u32 %s666, 1
              // While loop
              $region81: #{tpu_custom_call.1} parent=79 // loop_pre_header
                _
              $region82: #{tpu_custom_call.1} parent=79 // loop_header
                %s682 = sphi 0, %s684
                %p683 = scmp.ge.s32.totalorder %s682, %s680
                %s687 = sphi 0, %s696
                %s688 = sphi %s659, %s699
                %s689 = sphi %s670, %s700
              $region83: #{tpu_custom_call.1} parent=79 // loop_header_branch
                %686 = sbr.rel (%p683) target = $region87
              $region84: #{tpu_custom_call.1} parent=79 // loop_body
                %v690 = vld [vmem:[%s688] sm:%s679]
                %691 = vst [vmem:[%s689] sm:%s679] %v690
                %v692 = vld [vmem:[%s688 + $0x8] sm:%s679]
                %693 = vst [vmem:[%s689 + $0x8] sm:%s679] %v692
                %s694 = sadd.s32 1, %s687
                %p695 = scmp.ge.s32.totalorder %s694, %s680
                %s696 = scalar_select %p695, 0, %s694
                %s697 = smul.u32 %s696, 16
                %s698 = smul.u32 %s696, 16
                %s699 = scalar_lea.vmem %s659, %s697 [#allocation10]
                %s700 = scalar_lea.vmem %s670, %s698
              $region85: #{tpu_custom_call.1} parent=79 // loop_footer
                %s684 = sadd.s32 %s682, 1
              $region86: #{tpu_custom_call.1} parent=79 // loop_footer_branch
                %681 = sbr.rel target = $region82
              $region87: #{tpu_custom_call.1} parent=79 // loop_exit
                _
              %s701 = sshrl.u32 %s666, 1
              %s702 = sand.u32 %s666, 1
              %s703 = smul.u32 %s701, 2
              %s704 = smul.u32 8, %s703
              %s705 = scalar_lea.vmem %s659, %s704 [#allocation10]
              %s706 = smul.u32 8, %s703
              %s707 = scalar_lea.vmem %s670, %s706
              // While loop
              $region88: #{tpu_custom_call.1} parent=79 // loop_pre_header
                _
              $region89: #{tpu_custom_call.1} parent=79 // loop_header
                %s709 = sphi 0, %s711
                %p710 = scmp.ge.s32.totalorder %s709, %s702
                %s714 = sphi 0, %s721
                %s715 = sphi %s705, %s724
                %s716 = sphi %s707, %s725
              $region90: #{tpu_custom_call.1} parent=79 // loop_header_branch
                %713 = sbr.rel (%p710) target = $region94
              $region91: #{tpu_custom_call.1} parent=79 // loop_body
                %v717 = vld [vmem:[%s715] sm:%s679]
                %718 = vst [vmem:[%s716] sm:%s679] %v717
                %s719 = sadd.s32 1, %s714
                %p720 = scmp.ge.s32.totalorder %s719, %s702
                %s721 = scalar_select %p720, 0, %s719
                %s722 = smul.u32 %s721, 8
                %s723 = smul.u32 %s721, 8
                %s724 = scalar_lea.vmem %s705, %s722 [#allocation10]
                %s725 = scalar_lea.vmem %s707, %s723
              $region92: #{tpu_custom_call.1} parent=79 // loop_footer
                %s711 = sadd.s32 %s709, 1
              $region93: #{tpu_custom_call.1} parent=79 // loop_footer_branch
                %708 = sbr.rel target = $region89
              $region94: #{tpu_custom_call.1} parent=79 // loop_exit
                _
            $region80: #{tpu_custom_call.1} parent=71 // pred_fallthru
              _
          $region72: #{tpu_custom_call.1} parent=67 // pred_fallthru
            _
          %776 = vnop
        $region68: #{tpu_custom_call.1} parent=47 // pred_fallthru
          _
      $region48: #{tpu_custom_call.1} parent=5 // pred_fallthru
        _
      %p777 = scmp.le.s32.totalorder 2, %s22
      // Predicated region
      $region117: #{tpu_custom_call.1} parent=5 // pred_check
        %p778 = pneg %p777
      $region118: #{tpu_custom_call.1} parent=5 // pred_check_branch
        %780 = sbr.rel (%p778) target = $region120
      $region119: #{tpu_custom_call.1} parent=5 // pred_region
        %s781 = ssub.s32 %s22, 2
        // Predicated region
        $region121: #{tpu_custom_call.1} parent=119 // pred_check
          %p782 = pneg %p208
        $region122: #{tpu_custom_call.1} parent=119 // pred_check_branch
          %784 = sbr.rel (%p782) target = $region124
        $region123: #{tpu_custom_call.1} parent=119 // pred_region
          %s785 = sand.u32 %s193, 1
          %s786 = sand.u32 %s193, 1
          %s787 = smul.addr %s786, 16
          %s788 = scalar_lea.vmem [#allocation10], %s787
        $region124: #{tpu_custom_call.1} parent=119 // pred_fallthru
          _
      $region120: #{tpu_custom_call.1} parent=5 // pred_fallthru
        _
    $region6: #{tpu_custom_call.1} parent=1 // loop_footer
      %s26 = sadd.s32 1, %s22
    $region7: #{tpu_custom_call.1} parent=1 // loop_footer_branch
      %21 = sbr.rel target = $region3
    $region8: #{tpu_custom_call.1} parent=1 // loop_exit
      _
    %789 = vsyncpa [#allocation4], 1
    %s790 = scalar_lea.sflag [#allocation4], 1
    %791 = vsyncpa %s790, 1
    %792 = vsyncpa [#allocation6], 1
    %s793 = scalar_lea.sflag [#allocation6], 1
    %794 = vsyncpa %s793, 1
    %795 = vsyncpa [#allocation9], 1

</llo_original>
